<compile_context>
chip_gen: v6e
topology: v6e:2x2x1
jax: 0.10.0
libtpu: 0.0.40
codegen_flags: <defaults>
</compile_context>

<pallas_src>
import jax
import jax.numpy as jnp
from jax.experimental import pallas as pl
from jax.experimental.pallas import tpu as pltpu


_H1, _H2 = 512, 128          # hidden sizes fixed by the PyTorch module
_LANE = 128
_SUBLANE = 8


def _round_up(x, m):
    return ((x + m - 1) // m) * m


def _mlp_kernel(x_ref, w1_ref, b1_ref, w2_ref, b2_ref, w3_ref, b3_ref,
                o_ref, h1_acc):
    """Fused 3-layer MLP; the layer-1 matmul is K-tiled over the vocab axis."""
    k = pl.program_id(1)

    @pl.when(k == 0)
    def _():
        h1_acc[...] = jnp.zeros_like(h1_acc)

    # x arrives f32; cast to bf16 on-chip feeds the MXU (f32 accumulation).
    xb = x_ref[...].astype(jnp.bfloat16)
    h1_acc[...] += jnp.dot(xb, w1_ref[...], preferred_element_type=jnp.float32)

    @pl.when(k == pl.num_programs(1) - 1)
    def _():
        h1 = jnp.maximum(h1_acc[...] + b1_ref[...], 0.0)           # f32 VPU
        h2 = jnp.dot(h1.astype(jnp.bfloat16), w2_ref[...],
                     preferred_element_type=jnp.float32)
        h2 = jnp.maximum(h2 + b2_ref[...], 0.0)                    # f32 VPU
        y = jnp.dot(h2.astype(jnp.bfloat16), w3_ref[...],
                    preferred_element_type=jnp.float32)
        o_ref[...] = (y + b3_ref[...]).astype(o_ref.dtype)


def _vmem_capacity_bytes():
    # Generation-aware physical VMEM (v5e/v6e: 128 MiB, v7x: 64 MiB per TC).
    try:
        return int(pltpu.get_tpu_info().vmem_capacity_bytes)
    except Exception:
        return 64 << 20   # conservative default if the query is unavailable


def _build_call(b_pad, v_pad, l_pad, tile_b, tile_k):
    grid = (b_pad // tile_b, v_pad // tile_k)   # (batch: parallel, vocab: reduction)

    def const2(i, k):
        return (0, 0)

    in_specs = [
        pl.BlockSpec((tile_b, tile_k), lambda i, k: (i, k)),    # x  (f32 tiles)
        pl.BlockSpec((tile_k, _H1), lambda i, k: (k, 0)),       # w1 (K-tiled bf16)
        pl.BlockSpec((1, _H1), const2),                         # b1
        pl.BlockSpec((_H1, _H2), const2),                       # w2
        pl.BlockSpec((1, _H2), const2),                         # b2
        pl.BlockSpec((_H2, l_pad), const2),                     # w3 (lane-padded)
        pl.BlockSpec((1, l_pad), const2),                       # b3 (lane-padded)
    ]
    out_specs = pl.BlockSpec((tile_b, l_pad), lambda i, k: (i, 0))

    f32, bf16 = 4, 2
    vmem_needed = (
        2 * tile_b * tile_k * f32                     # x tiles (double-buffered, f32)
        + 2 * tile_k * _H1 * bf16                     # w1 K-slices (double-buffered)
        + 2 * (_H1 * _H2 + _H2 * l_pad) * bf16        # w2 / w3 (constant index, small)
        + 2 * (_H1 + _H2 + l_pad) * f32               # biases
        + 2 * tile_b * l_pad * f32                    # output tiles
        + tile_b * _H1 * f32                          # h1 accumulator scratch
        + tile_b * (_H1 + _H2) * f32                  # live intermediates
    )
    vmem_limit = min(max(int(1.5 * vmem_needed) + (4 << 20), 32 << 20),
                     int(0.85 * _vmem_capacity_bytes()))

    cost = pl.CostEstimate(
        flops=2 * b_pad * (v_pad * _H1 + _H1 * _H2 + _H2 * l_pad),
        transcendentals=0,
        bytes_accessed=(b_pad * v_pad * f32
                        + (v_pad * _H1 + _H1 * _H2 + _H2 * l_pad) * bf16
                        + (_H1 + _H2 + l_pad) * f32
                        + b_pad * l_pad * f32),
    )

    return pl.pallas_call(
        _mlp_kernel,
        out_shape=jax.ShapeDtypeStruct((b_pad, l_pad), jnp.float32),
        grid=grid,
        in_specs=in_specs,
        out_specs=out_specs,
        scratch_shapes=[pltpu.VMEM((tile_b, _H1), jnp.float32)],
        compiler_params=pltpu.CompilerParams(
            dimension_semantics=("parallel", "arbitrary"),
            vmem_limit_bytes=vmem_limit,
        ),
        cost_estimate=cost,
    )


def prepare_params(params, *, max_tile_k=512):
    """One-time parameter prep (do NOT call per forward): cast weights to bf16,
    reshape biases to (1, out), lane-pad the last layer to 128, and pad the
    vocab axis of W1 so the kernel's K tiling divides it evenly."""
    w1, b1 = params["w1"], params["b1"]
    w2, b2 = params["w2"], params["b2"]
    w3, b3 = params["w3"], params["b3"]

    V, h1 = w1.shape
    h2, L = w3.shape
    assert h1 == _H1 and w2.shape == (_H1, _H2) and h2 == _H2

    tile_k = min(V, max_tile_k)
    if tile_k < V:
        tile_k = _round_up(tile_k, _LANE)      # multi-step K must be lane-aligned
        v_pad = _round_up(V, tile_k)
    else:
        v_pad = V                               # single K step: full-dim block is legal

    l_pad = _round_up(L, _LANE)                 # lane-dense output (unmasked stores)

    w1b = w1.astype(jnp.bfloat16)
    if v_pad != V:
        w1b = jnp.pad(w1b, ((0, v_pad - V), (0, 0)))

    w3b = w3.astype(jnp.bfloat16)
    b3f = b3.astype(jnp.float32).reshape(1, L)
    if l_pad != L:
        w3b = jnp.pad(w3b, ((0, 0), (0, l_pad - L)))
        b3f = jnp.pad(b3f, ((0, 0), (0, l_pad - L)))

    # TODO(synk): for very large vocab, an int8 (v5e/v6e) / fp8 (v7x) W1 path
    # with per-channel scales would halve layer-1 DMA and double MXU rate.
    return {
        "w1": w1b, "b1": b1.astype(jnp.float32).reshape(1, _H1),
        "w2": w2.astype(jnp.bfloat16),
        "b2": b2.astype(jnp.float32).reshape(1, _H2),
        "w3": w3b, "b3": b3f,
        "V": V, "L": L, "v_pad": v_pad, "l_pad": l_pad, "tile_k": tile_k,
    }


def perceptron_forward(x, prepared, *, tile_b=256):
    """x: [B, vocab_size] float. prepared: output of prepare_params()."""
    V, L = prepared["V"], prepared["L"]
    v_pad, l_pad, tile_k = prepared["v_pad"], prepared["l_pad"], prepared["tile_k"]
    B = x.shape[0]
    assert x.shape[1] == V

    # Batch tile: big enough to fill MXU rows / amortize per-step overhead,
    # clamped for small batches (sublane multiple of 8), and split so large
    # batches give >= 2 grid steps for megacore sharding (v7x has 2 TCs).
    tile_b = max(_SUBLANE,
                 _round_up(min(tile_b, _round_up(B, _SUBLANE)), _SUBLANE))
    if B >= 2 * _LANE and B <= tile_b:
        tile_b = max(_LANE, _round_up((B + 1) // 2, _SUBLANE))
    b_pad = _round_up(B, tile_b)

    # x stays f32 into the kernel (bf16 cast happens on-chip); zero-pad batch /
    # vocab only when needed.
    x_in = x.astype(jnp.float32)
    if b_pad != B or v_pad != V:
        x_in = jnp.pad(x_in, ((0, b_pad - B), (0, v_pad - V)))

    out = _build_call(b_pad, v_pad, l_pad, tile_b, tile_k)(
        x_in,
        prepared["w1"], prepared["b1"],
        prepared["w2"], prepared["b2"],
        prepared["w3"], prepared["b3"],
    )
    return out[:B, :L]


def init_params(key, vocab_size, label):
    """Deterministic init matching nn.Linear shapes (weights stored [in, out])."""
    k1, k2, k3, k4, k5, k6 = jax.random.split(key, 6)

    def lin_init(kw, kb, fan_in, fan_out):
        bound = 1.0 / jnp.sqrt(fan_in)
        w = jax.random.uniform(kw, (fan_in, fan_out), jnp.float32, -bound, bound)
        b = jax.random.uniform(kb, (1, fan_out), jnp.float32, -bound, bound)
        return w, b

    w1, b1 = lin_init(k1, k2, vocab_size, _H1)
    w2, b2 = lin_init(k3, k4, _H1, _H2)
    w3, b3 = lin_init(k5, k6, _H2, label)
    return {"w1": w1, "b1": b1, "w2": w2, "b2": b2, "w3": w3, "b3": b3}


def perceptron_reference_f32(x, p):
    h1 = jnp.maximum(x @ p["w1"] + p["b1"], 0.0)
    h2 = jnp.maximum(h1 @ p["w2"] + p["b2"], 0.0)
    return h2 @ p["w3"] + p["b3"]


def perceptron_reference_bf16(x, p):
    # Mirrors the kernel's numerics: bf16 MXU operands, f32 accumulation.
    xb = x.astype(jnp.bfloat16)
    w1, w2, w3 = (p["w1"].astype(jnp.bfloat16), p["w2"].astype(jnp.bfloat16),
                  p["w3"].astype(jnp.bfloat16))
    h1 = jnp.maximum(
        jnp.dot(xb, w1, preferred_element_type=jnp.float32) + p["b1"], 0.0)
    h2 = jnp.maximum(
        jnp.dot(h1.astype(jnp.bfloat16), w2,
                preferred_element_type=jnp.float32) + p["b2"], 0.0)
    return jnp.dot(h2.astype(jnp.bfloat16), w3,
                   preferred_element_type=jnp.float32) + p["b3"]


if __name__ == "__main__":
    key = jax.random.PRNGKey(0)
    k_param, k_x = jax.random.split(key)

    batch = 40          # deliberately not a multiple of the small tile below
    vocab_size = 256
    label = 16          # lane-sparse -> exercised lane-padding path

    params = init_params(k_param, vocab_size, label)
    x = jax.random.normal(k_x, (batch, vocab_size), jnp.float32)

    # One-time parameter prep (bf16 weights, padding); default: single K step.
    prepared = prepare_params(params)
    out = jax.block_until_ready(perceptron_forward(x, prepared))

    # Force vocab K-tiling (2 K steps) to exercise the accumulator path.
    prepared_kt = prepare_params(params, max_tile_k=128)
    out_ktiled = jax.block_until_ready(perceptron_forward(x, prepared_kt))

    # Small explicit batch tile -> multi-step batch grid + batch padding path.
    out_btiled = jax.block_until_ready(
        perceptron_forward(x, prepared, tile_b=16))

    ref_bf16 = perceptron_reference_bf16(x, params)
    ref_f32 = perceptron_reference_f32(x, params)

    assert out.shape == (batch, label)
    assert jnp.allclose(out, ref_bf16, atol=2e-3, rtol=2e-3), "mismatch vs bf16 ref"
    assert jnp.allclose(out_ktiled, ref_bf16, atol=2e-3, rtol=2e-3), "mismatch (K-tiled)"
    assert jnp.allclose(out_btiled, ref_bf16, atol=2e-3, rtol=2e-3), "mismatch (B-tiled)"
    # bf16 operands + f32 accumulation vs pure f32 math: small, expected drift.
    assert jnp.allclose(out, ref_f32, atol=5e-2, rtol=5e-2), "mismatch vs f32 ref"

    print("KERNEL_OK")
</pallas_src>

<mosaic_0001>
module attributes {stable_mosaic.version = 11 : i64} {
  func.func @_mlp_kernel(%arg0: i32, %arg1: i32, %arg2: memref<40x256xf32, #tpu.memory_space<vmem>>, %arg3: memref<256x512xbf16, #tpu.memory_space<vmem>>, %arg4: memref<1x512xf32, #tpu.memory_space<vmem>>, %arg5: memref<512x128xbf16, #tpu.memory_space<vmem>>, %arg6: memref<1x128xf32, #tpu.memory_space<vmem>>, %arg7: memref<128x128xbf16, #tpu.memory_space<vmem>>, %arg8: memref<1x128xf32, #tpu.memory_space<vmem>>, %arg9: memref<40x128xf32, #tpu.memory_space<vmem>>, %arg10: memref<40x512xf32, #tpu.memory_space<vmem>>) attributes {dimension_semantics = [#tpu.dimension_semantics<parallel>, #tpu.dimension_semantics<arbitrary>], iteration_bounds = array<i64: 1, 1>, scalar_prefetch = 0 : i64, scratch_operands = 1 : i64, tpu.core_type = #tpu.core_type<tc>, window_params = [{transform_indices = @transform_0, window_bounds = array<i64: 40, 256>}, {transform_indices = @transform_1, window_bounds = array<i64: 256, 512>}, {pipeline_mode = #tpu.pipeline_mode<synchronous>, transform_indices = @transform_2, window_bounds = array<i64: 1, 512>}, {pipeline_mode = #tpu.pipeline_mode<synchronous>, transform_indices = @transform_3, window_bounds = array<i64: 512, 128>}, {pipeline_mode = #tpu.pipeline_mode<synchronous>, transform_indices = @transform_4, window_bounds = array<i64: 1, 128>}, {pipeline_mode = #tpu.pipeline_mode<synchronous>, transform_indices = @transform_5, window_bounds = array<i64: 128, 128>}, {pipeline_mode = #tpu.pipeline_mode<synchronous>, transform_indices = @transform_6, window_bounds = array<i64: 1, 128>}, {transform_indices = @transform_7, window_bounds = array<i64: 40, 128>}]} {
    %c0_i32 = arith.constant 0 : i32
    %0 = arith.cmpi eq, %arg1, %c0_i32 : i32
    %1 = arith.extui %0 : i1 to i32
    %c0_i32_0 = arith.constant 0 : i32
    %2 = arith.cmpi ne, %1, %c0_i32_0 : i32
    scf.if %2 {
      %cst_10 = arith.constant 0.000000e+00 : f32
      %13 = vector.broadcast %cst_10 : f32 to vector<40x512xf32>
      %c0_11 = arith.constant 0 : index
      %c0_12 = arith.constant 0 : index
      %14 = vector.load %arg10[%c0_11, %c0_12] : memref<40x512xf32, #tpu.memory_space<vmem>>, vector<40x512xf32>
      tpu.vector_store %arg10[%c0_11, %c0_12], %13 {strides = array<i32>} : memref<40x512xf32, #tpu.memory_space<vmem>>, vector<40x512xf32>,
    } else {
    }
    %c0 = arith.constant 0 : index
    %c0_1 = arith.constant 0 : index
    %3 = vector.load %arg2[%c0, %c0_1] : memref<40x256xf32, #tpu.memory_space<vmem>>, vector<40x256xf32>
    %4 = arith.truncf %3 : vector<40x256xf32> to vector<40x256xbf16>
    %c0_2 = arith.constant 0 : index
    %c0_3 = arith.constant 0 : index
    %5 = vector.load %arg10[%c0_2, %c0_3] : memref<40x512xf32, #tpu.memory_space<vmem>>, vector<40x512xf32>
    %c0_4 = arith.constant 0 : index
    %c0_5 = arith.constant 0 : index
    %6 = vector.load %arg3[%c0_4, %c0_5] : memref<256x512xbf16, #tpu.memory_space<vmem>>, vector<256x512xbf16>
    %cst = arith.constant dense<0.000000e+00> : vector<40x512xf32>
    %7 = tpu.matmul %4, %6, %cst {dimension_numbers = #tpu.dot_dimension_numbers<[1], [0], [0], [1], [0, 0, 1, 1], [], []>} : vector<40x256xbf16>, vector<256x512xbf16>, vector<40x512xf32> -> vector<40x512xf32>
    %8 = arith.addf %5, %7 : vector<40x512xf32>
    %c0_6 = arith.constant 0 : index
    %c0_7 = arith.constant 0 : index
    %9 = vector.load %arg10[%c0_6, %c0_7] : memref<40x512xf32, #tpu.memory_space<vmem>>, vector<40x512xf32>
    tpu.vector_store %arg10[%c0_6, %c0_7], %8 {strides = array<i32>} : memref<40x512xf32, #tpu.memory_space<vmem>>, vector<40x512xf32>,
    %c0_i32_8 = arith.constant 0 : i32
    %10 = arith.cmpi eq, %arg1, %c0_i32_8 : i32
    %11 = arith.extui %10 : i1 to i32
    %c0_i32_9 = arith.constant 0 : i32
    %12 = arith.cmpi ne, %11, %c0_i32_9 : i32
    scf.if %12 {
      %c0_10 = arith.constant 0 : index
      %c0_11 = arith.constant 0 : index
      %13 = vector.load %arg10[%c0_10, %c0_11] : memref<40x512xf32, #tpu.memory_space<vmem>>, vector<40x512xf32>
      %c0_12 = arith.constant 0 : index
      %c0_13 = arith.constant 0 : index
      %14 = vector.load %arg4[%c0_12, %c0_13] : memref<1x512xf32, #tpu.memory_space<vmem>>, vector<1x512xf32>
      %15 = vector.broadcast %14 : vector<1x512xf32> to vector<40x512xf32>
      %16 = arith.addf %13, %15 : vector<40x512xf32>
      %cst_14 = arith.constant 0.000000e+00 : f32
      %17 = vector.broadcast %cst_14 : f32 to vector<40x512xf32>
      %18 = arith.maximumf %16, %17 : vector<40x512xf32>
      %19 = arith.truncf %18 : vector<40x512xf32> to vector<40x512xbf16>
      %c0_15 = arith.constant 0 : index
      %c0_16 = arith.constant 0 : index
      %20 = vector.load %arg5[%c0_15, %c0_16] : memref<512x128xbf16, #tpu.memory_space<vmem>>, vector<512x128xbf16>
      %cst_17 = arith.constant dense<0.000000e+00> : vector<40x128xf32>
      %21 = tpu.matmul %19, %20, %cst_17 {dimension_numbers = #tpu.dot_dimension_numbers<[1], [0], [0], [1], [0, 0, 1, 1], [], []>} : vector<40x512xbf16>, vector<512x128xbf16>, vector<40x128xf32> -> vector<40x128xf32>
      %c0_18 = arith.constant 0 : index
      %c0_19 = arith.constant 0 : index
      %22 = vector.load %arg6[%c0_18, %c0_19] : memref<1x128xf32, #tpu.memory_space<vmem>>, vector<1x128xf32>
      %23 = vector.broadcast %22 : vector<1x128xf32> to vector<40x128xf32>
      %24 = arith.addf %21, %23 : vector<40x128xf32>
      %cst_20 = arith.constant 0.000000e+00 : f32
      %25 = vector.broadcast %cst_20 : f32 to vector<40x128xf32>
      %26 = arith.maximumf %24, %25 : vector<40x128xf32>
      %27 = arith.truncf %26 : vector<40x128xf32> to vector<40x128xbf16>
      %c0_21 = arith.constant 0 : index
      %c0_22 = arith.constant 0 : index
      %28 = vector.load %arg7[%c0_21, %c0_22] : memref<128x128xbf16, #tpu.memory_space<vmem>>, vector<128x128xbf16>
      %cst_23 = arith.constant dense<0.000000e+00> : vector<40x128xf32>
      %29 = tpu.matmul %27, %28, %cst_23 {dimension_numbers = #tpu.dot_dimension_numbers<[1], [0], [0], [1], [0, 0, 1, 1], [], []>} : vector<40x128xbf16>, vector<128x128xbf16>, vector<40x128xf32> -> vector<40x128xf32>
      %c0_24 = arith.constant 0 : index
      %c0_25 = arith.constant 0 : index
      %30 = vector.load %arg8[%c0_24, %c0_25] : memref<1x128xf32, #tpu.memory_space<vmem>>, vector<1x128xf32>
      %31 = vector.broadcast %30 : vector<1x128xf32> to vector<40x128xf32>
      %32 = arith.addf %29, %31 : vector<40x128xf32>
      %c0_26 = arith.constant 0 : index
      %c0_27 = arith.constant 0 : index
      %33 = vector.load %arg9[%c0_26, %c0_27] : memref<40x128xf32, #tpu.memory_space<vmem>>, vector<40x128xf32>
      tpu.vector_store %arg9[%c0_26, %c0_27], %32 {strides = array<i32>} : memref<40x128xf32, #tpu.memory_space<vmem>>, vector<40x128xf32>,
    } else {
    }
    return
  }
  func.func @transform_0(%arg0: i32, %arg1: i32) -> (i32, i32) {
    %c0_i32 = arith.constant 0 : i32
    return %arg0, %arg1 : i32, i32
  }
  func.func @transform_1(%arg0: i32, %arg1: i32) -> (i32, i32) {
    %c0_i32 = arith.constant 0 : i32
    %c0_i32_0 = arith.constant 0 : i32
    return %arg1, %c0_i32 : i32, i32
  }
  func.func @transform_2(%arg0: i32, %arg1: i32) -> (i32, i32) {
    %c0_i32 = arith.constant 0 : i32
    %c0_i32_0 = arith.constant 0 : i32
    %c0_i32_1 = arith.constant 0 : i32
    return %c0_i32, %c0_i32_0 : i32, i32
  }
  func.func @transform_3(%arg0: i32, %arg1: i32) -> (i32, i32) {
    %c0_i32 = arith.constant 0 : i32
    %c0_i32_0 = arith.constant 0 : i32
    %c0_i32_1 = arith.constant 0 : i32
    return %c0_i32, %c0_i32_0 : i32, i32
  }
  func.func @transform_4(%arg0: i32, %arg1: i32) -> (i32, i32) {
    %c0_i32 = arith.constant 0 : i32
    %c0_i32_0 = arith.constant 0 : i32
    %c0_i32_1 = arith.constant 0 : i32
    return %c0_i32, %c0_i32_0 : i32, i32
  }
  func.func @transform_5(%arg0: i32, %arg1: i32) -> (i32, i32) {
    %c0_i32 = arith.constant 0 : i32
    %c0_i32_0 = arith.constant 0 : i32
    %c0_i32_1 = arith.constant 0 : i32
    return %c0_i32, %c0_i32_0 : i32, i32
  }
  func.func @transform_6(%arg0: i32, %arg1: i32) -> (i32, i32) {
    %c0_i32 = arith.constant 0 : i32
    %c0_i32_0 = arith.constant 0 : i32
    %c0_i32_1 = arith.constant 0 : i32
    return %c0_i32, %c0_i32_0 : i32, i32
  }
  func.func @transform_7(%arg0: i32, %arg1: i32) -> (i32, i32) {
    %c0_i32 = arith.constant 0 : i32
    %c0_i32_0 = arith.constant 0 : i32
    return %arg0, %c0_i32 : i32, i32
  }
}

</mosaic_0001>

<llo_original>
// kernel: tpu_custom_call.1
$region0: #{tpu_custom_call.1}
  #allocation0 [shape = 'u32[]', space=smem, size = 0x4, offset = 0x4, fixed_abs, tag = 'smem constant byte address 0x4 - core index']
  #allocation1 [shape = 'u32[144,128]{1,0:T(1,128)}', space=vmem, size = 0x12000, scoped, tag = 'internal scratch']
  #allocation2 [shape = 'f32[40,512]{1,0:T(8,128)}', space=vmem, size = 0x14000, scoped, tag = 'scratch operand']
  %s0 = inlined_call_operand.hbm [shape: f32[40,256], index: 0, kind: input, shape index: {}]
  %s1 = inlined_call_operand.hbm [shape: bf16[256,512], index: 1, kind: input, shape index: {}]
  %s2 = inlined_call_operand.hbm [shape: f32[1,512], index: 2, kind: input, shape index: {}]
  %s3 = inlined_call_operand.hbm [shape: bf16[512,128], index: 3, kind: input, shape index: {}]
  %s4 = inlined_call_operand.vmem [shape: f32[1,128], index: 4, kind: input, shape index: {}]
  %s5 = inlined_call_operand.hbm [shape: bf16[128,128], index: 5, kind: input, shape index: {}]
  %s6 = inlined_call_operand.vmem [shape: f32[1,128], index: 6, kind: input, shape index: {}]
  %s7 = inlined_call_operand.hbm [shape: f32[40,128], index: 7, kind: output, shape index: {}]
  %s8 = sld [smem:[#allocation0]]
  $region66: #{tpu_custom_call.1} parent=0
    _
  %s10 = ssub.s32 1, %s8
  %s11 = scalar_select 0, %s10, %s8
  $region1: #{tpu_custom_call.1} parent=0
    #allocation3 [shape = 'u8[40960]{0}', space=vmem, size = 0xa000, scoped, tag = 'input window, operand 0, single buffered']
    #allocation4 [shape = 's32[1]{0}', space=sflag, size = 0x4, scoped, tag = 'scoped memory for tpu_custom_call.1']
    #allocation5 [shape = 's32[1]{0}', space=sflag, size = 0x4, scoped, tag = 'scoped memory for tpu_custom_call.1']
    #allocation6 [shape = 'u8[262144]{0}', space=vmem, size = 0x40000, scoped, tag = 'input window, operand 1, single buffered']
    #allocation7 [shape = 's32[1]{0}', space=sflag, size = 0x4, scoped, tag = 'scoped memory for tpu_custom_call.1']
    #allocation8 [shape = 'u8[2048]{0}', space=vmem, size = 0x800, scoped, tag = 'input window, operand 2, single buffered']
    #allocation9 [shape = 'u8[131072]{0}', space=vmem, size = 0x20000, scoped, tag = 'input window, operand 3, single buffered']
    #allocation10 [shape = 's32[1]{0}', space=sflag, size = 0x4, scoped, tag = 'scoped memory for tpu_custom_call.1']
    #allocation11 [shape = 'u8[32768]{0}', space=vmem, size = 0x8000, scoped, tag = 'input window, operand 5, single buffered']
    #allocation12 [shape = 'u8[20480]{0}', space=vmem, size = 0x5000, scoped, tag = 'output window, operand 0, single buffered']
    %12 = vsyncpa [#allocation4], 0
    %13 = vsyncpa [#allocation7], 0
    %14 = vsyncpa [#allocation10], 0
    %15 = vsyncpa [#allocation5], 0
    // Predicated region
    $region2: #{tpu_custom_call.1} parent=1 // pred_check
      _
    $region3: #{tpu_custom_call.1} parent=1 // pred_check_branch
      %17 = sbr.rel (0) target = $region5
    $region4: #{tpu_custom_call.1} parent=1 // pred_region
      %s19 = ssub.s32 1280, 1280
      %20 = vsyncadd [#allocation4], %s19
      %s21 = sshll.u32 [#allocation3], 4
      %s22 = int_to_ptr.vmem [resolvable:$true] %s21
      %27 = dma.hbm_to_vmem [thread:$0]  %s0, 1280, %s22, [#allocation4], 256, 256, 16
    $region5: #{tpu_custom_call.1} parent=1 // pred_fallthru
      _
    // Predicated region
    $region6: #{tpu_custom_call.1} parent=1 // pred_check
      _
    $region7: #{tpu_custom_call.1} parent=1 // pred_check_branch
      %29 = sbr.rel (0) target = $region9
    $region8: #{tpu_custom_call.1} parent=1 // pred_region
      %s31 = ssub.s32 8192, 8192
      %32 = vsyncadd [#allocation7], %s31
      %s33 = sshll.u32 [#allocation6], 4
      %s34 = int_to_ptr.vmem [resolvable:$true] %s33
      %39 = dma.hbm_to_vmem [thread:$0]  %s1, 8192, %s34, [#allocation7], 256, 256, 16
    $region9: #{tpu_custom_call.1} parent=1 // pred_fallthru
      _
    // Predicated region
    $region10: #{tpu_custom_call.1} parent=1 // pred_check
      _
    $region11: #{tpu_custom_call.1} parent=1 // pred_check_branch
      %41 = sbr.rel (0) target = $region13
    $region12: #{tpu_custom_call.1} parent=1 // pred_region
      %s43 = ssub.s32 64, 64
      %44 = vsyncadd [#allocation7], %s43
      %s46 = sshll.u32 [#allocation8], 4
      %s47 = int_to_ptr.vmem [resolvable:$true] %s46
      %49 = dma.hbm_to_vmem [thread:$0]  %s2, 64, %s47, [#allocation7]
    $region13: #{tpu_custom_call.1} parent=1 // pred_fallthru
      _
    // Predicated region
    $region14: #{tpu_custom_call.1} parent=1 // pred_check
      _
    $region15: #{tpu_custom_call.1} parent=1 // pred_check_branch
      %51 = sbr.rel (0) target = $region17
    $region16: #{tpu_custom_call.1} parent=1 // pred_region
      %s53 = ssub.s32 4096, 4096
      %54 = vsyncadd [#allocation10], %s53
      %s55 = sshll.u32 [#allocation9], 4
      %s56 = int_to_ptr.vmem [resolvable:$true] %s55
      %61 = dma.hbm_to_vmem [thread:$0]  %s3, 4096, %s56, [#allocation10], 64, 64, 4
    $region17: #{tpu_custom_call.1} parent=1 // pred_fallthru
      _
    // Predicated region
    $region18: #{tpu_custom_call.1} parent=1 // pred_check
      _
    $region19: #{tpu_custom_call.1} parent=1 // pred_check_branch
      %63 = sbr.rel (0) target = $region21
    $region20: #{tpu_custom_call.1} parent=1 // pred_region
      _
    $region21: #{tpu_custom_call.1} parent=1 // pred_fallthru
      _
    // Predicated region
    $region22: #{tpu_custom_call.1} parent=1 // pred_check
      _
    $region23: #{tpu_custom_call.1} parent=1 // pred_check_branch
      %65 = sbr.rel (0) target = $region25
    $region24: #{tpu_custom_call.1} parent=1 // pred_region
      %s67 = ssub.s32 1024, 1024
      %68 = vsyncadd [#allocation10], %s67
      %s69 = sshll.u32 [#allocation11], 4
      %s70 = int_to_ptr.vmem [resolvable:$true] %s69
      %75 = dma.hbm_to_vmem [thread:$0]  %s5, 1024, %s70, [#allocation10], 64, 64, 4
    $region25: #{tpu_custom_call.1} parent=1 // pred_fallthru
      _
    // Predicated region
    $region26: #{tpu_custom_call.1} parent=1 // pred_check
      _
    $region27: #{tpu_custom_call.1} parent=1 // pred_check_branch
      %77 = sbr.rel (0) target = $region29
    $region28: #{tpu_custom_call.1} parent=1 // pred_region
      _
    $region29: #{tpu_custom_call.1} parent=1 // pred_fallthru
      _
    // Predicated region
    $region30: #{tpu_custom_call.1} parent=1 // pred_check
      _
    $region31: #{tpu_custom_call.1} parent=1 // pred_check_branch
      %79 = sbr.rel (0) target = $region33
    $region32: #{tpu_custom_call.1} parent=1 // pred_region
      %80 = dma.done [#allocation4], 1280
    $region33: #{tpu_custom_call.1} parent=1 // pred_fallthru
      _
    // Predicated region
    $region34: #{tpu_custom_call.1} parent=1 // pred_check
      _
    $region35: #{tpu_custom_call.1} parent=1 // pred_check_branch
      %82 = sbr.rel (0) target = $region37
    $region36: #{tpu_custom_call.1} parent=1 // pred_region
      %83 = dma.done [#allocation7], 8192
    $region37: #{tpu_custom_call.1} parent=1 // pred_fallthru
      _
    // Predicated region
    $region38: #{tpu_custom_call.1} parent=1 // pred_check
      _
    $region39: #{tpu_custom_call.1} parent=1 // pred_check_branch
      %85 = sbr.rel (0) target = $region41
    $region40: #{tpu_custom_call.1} parent=1 // pred_region
      %86 = dma.done [#allocation7], 64
    $region41: #{tpu_custom_call.1} parent=1 // pred_fallthru
      _
    // Predicated region
    $region42: #{tpu_custom_call.1} parent=1 // pred_check
      _
    $region43: #{tpu_custom_call.1} parent=1 // pred_check_branch
      %88 = sbr.rel (0) target = $region45
    $region44: #{tpu_custom_call.1} parent=1 // pred_region
      %89 = dma.done [#allocation10], 4096
    $region45: #{tpu_custom_call.1} parent=1 // pred_fallthru
      _
    // Predicated region
    $region46: #{tpu_custom_call.1} parent=1 // pred_check
      _
    $region47: #{tpu_custom_call.1} parent=1 // pred_check_branch
      %91 = sbr.rel (0) target = $region49
    $region48: #{tpu_custom_call.1} parent=1 // pred_region
      %92 = dma.done [#allocation10], 1024
    $region49: #{tpu_custom_call.1} parent=1 // pred_fallthru
      _
    %p94 = scmp.eq.s32.totalorder 0, 0
    // Predicated region
    $region50: #{tpu_custom_call.1} parent=1 // pred_check
      %p95 = pneg %p94
    $region51: #{tpu_custom_call.1} parent=1 // pred_check_branch
      %97 = sbr.rel (%p95) target = $region53
    $region52: #{tpu_custom_call.1} parent=1 // pred_region
      %98 = vst [vmem:[#allocation2] sm:$0xff] 0.0
      %99 = vst [vmem:[#allocation2 + $0x8] sm:$0xff] 0.0
      %100 = vst [vmem:[#allocation2 + $0x10] sm:$0xff] 0.0
      %101 = vst [vmem:[#allocation2 + $0x18] sm:$0xff] 0.0
      %102 = vst [vmem:[#allocation2 + $0x20] sm:$0xff] 0.0
      %103 = vst [vmem:[#allocation2 + $0x28] sm:$0xff] 0.0
      %104 = vst [vmem:[#allocation2 + $0x30] sm:$0xff] 0.0
      %105 = vst [vmem:[#allocation2 + $0x38] sm:$0xff] 0.0
      %106 = vst [vmem:[#allocation2 + $0x40] sm:$0xff] 0.0
      %107 = vst [vmem:[#allocation2 + $0x48] sm:$0xff] 0.0
      %108 = vst [vmem:[#allocation2 + $0x50] sm:$0xff] 0.0
      %109 = vst [vmem:[#allocation2 + $0x58] sm:$0xff] 0.0
      %110 = vst [vmem:[#allocation2 + $0x60] sm:$0xff] 0.0
      %111 = vst [vmem:[#allocation2 + $0x68] sm:$0xff] 0.0
      %112 = vst [vmem:[#allocation2 + $0x70] sm:$0xff] 0.0
      %113 = vst [vmem:[#allocation2 + $0x78] sm:$0xff] 0.0
      %114 = vst [vmem:[#allocation2 + $0x80] sm:$0xff] 0.0
      %115 = vst [vmem:[#allocation2 + $0x88] sm:$0xff] 0.0
      %116 = vst [vmem:[#allocation2 + $0x90] sm:$0xff] 0.0
      %117 = vst [vmem:[#allocation2 + $0x98] sm:$0xff] 0.0
    $region53: #{tpu_custom_call.1} parent=1 // pred_fallthru
      _
    %v118 = vld [vmem:[#allocation3] sm:$0xff]
    %v119 = vld [vmem:[#allocation3 + $0x8] sm:$0xff]
    %v120 = vld [vmem:[#allocation3 + $0x10] sm:$0xff]
    %v121 = vld [vmem:[#allocation3 + $0x18] sm:$0xff]
    %v122 = vld [vmem:[#allocation3 + $0x20] sm:$0xff]
    %v123 = vld [vmem:[#allocation3 + $0x28] sm:$0xff]
    %v124 = vld [vmem:[#allocation3 + $0x30] sm:$0xff]
    %v125 = vld [vmem:[#allocation3 + $0x38] sm:$0xff]
    %v126 = vld [vmem:[#allocation3 + $0x40] sm:$0xff]
    %v127 = vld [vmem:[#allocation3 + $0x48] sm:$0xff]
    %v128 = vpack.c.bf16 %v120, %v118
    %v129 = vpack.c.bf16 %v121, %v119
    %v130 = vpack.c.bf16 %v124, %v122
    %v131 = vpack.c.bf16 %v125, %v123
    %v132 = vpack.c.bf16 %v126, %v126
    %v133 = vpack.c.bf16 %v127, %v127
    %v134 = vld [vmem:[#allocation2] sm:$0xff]
    %v135 = vld [vmem:[#allocation2 + $0x8] sm:$0xff]
    %v136 = vld [vmem:[#allocation2 + $0x10] sm:$0xff]
    %v137 = vld [vmem:[#allocation2 + $0x18] sm:$0xff]
    %v138 = vld [vmem:[#allocation2 + $0x20] sm:$0xff]
    %v139 = vld [vmem:[#allocation2 + $0x28] sm:$0xff]
    %v140 = vld [vmem:[#allocation2 + $0x30] sm:$0xff]
    %v141 = vld [vmem:[#allocation2 + $0x38] sm:$0xff]
    %v142 = vld [vmem:[#allocation2 + $0x40] sm:$0xff]
    %v143 = vld [vmem:[#allocation2 + $0x48] sm:$0xff]
    %v144 = vld [vmem:[#allocation2 + $0x50] sm:$0xff]
    %v145 = vld [vmem:[#allocation2 + $0x58] sm:$0xff]
    %v146 = vld [vmem:[#allocation2 + $0x60] sm:$0xff]
    %v147 = vld [vmem:[#allocation2 + $0x68] sm:$0xff]
    %v148 = vld [vmem:[#allocation2 + $0x70] sm:$0xff]
    %v149 = vld [vmem:[#allocation2 + $0x78] sm:$0xff]
    %v150 = vld [vmem:[#allocation2 + $0x80] sm:$0xff]
    %v151 = vld [vmem:[#allocation2 + $0x88] sm:$0xff]
    %v152 = vld [vmem:[#allocation2 + $0x90] sm:$0xff]
    %v153 = vld [vmem:[#allocation2 + $0x98] sm:$0xff]
    %v154 = vld [vmem:[#allocation6] sm:$0xff]
    %v155 = vld [vmem:[#allocation6 + $0x8] sm:$0xff]
    %v156 = vld [vmem:[#allocation6 + $0x10] sm:$0xff]
    %v157 = vld [vmem:[#allocation6 + $0x18] sm:$0xff]
    %v158 = vld [vmem:[#allocation6 + $0x20] sm:$0xff]
    %v159 = vld [vmem:[#allocation6 + $0x28] sm:$0xff]
    %v160 = vld [vmem:[#allocation6 + $0x30] sm:$0xff]
    %v161 = vld [vmem:[#allocation6 + $0x38] sm:$0xff]
    %v162 = vld [vmem:[#allocation6 + $0x40] sm:$0xff]
    %v163 = vld [vmem:[#allocation6 + $0x48] sm:$0xff]
    %v164 = vld [vmem:[#allocation6 + $0x50] sm:$0xff]
    %v165 = vld [vmem:[#allocation6 + $0x58] sm:$0xff]
    %v166 = vld [vmem:[#allocation6 + $0x60] sm:$0xff]
    %v167 = vld [vmem:[#allocation6 + $0x68] sm:$0xff]
    %v168 = vld [vmem:[#allocation6 + $0x70] sm:$0xff]
    %v169 = vld [vmem:[#allocation6 + $0x78] sm:$0xff]
    %v170 = vld [vmem:[#allocation6 + $0x80] sm:$0xff]
    %v171 = vld [vmem:[#allocation6 + $0x88] sm:$0xff]
    %v172 = vld [vmem:[#allocation6 + $0x90] sm:$0xff]
    %v173 = vld [vmem:[#allocation6 + $0x98] sm:$0xff]
    %v174 = vld [vmem:[#allocation6 + $0xa0] sm:$0xff]
    %v175 = vld [vmem:[#allocation6 + $0xa8] sm:$0xff]
    %v176 = vld [vmem:[#allocation6 + $0xb0] sm:$0xff]
    %v177 = vld [vmem:[#allocation6 + $0xb8] sm:$0xff]
    %v178 = vld [vmem:[#allocation6 + $0xc0] sm:$0xff]
    %v179 = vld [vmem:[#allocation6 + $0xc8] sm:$0xff]
    %v180 = vld [vmem:[#allocation6 + $0xd0] sm:$0xff]
    %v181 = vld [vmem:[#allocation6 + $0xd8] sm:$0xff]
    %v182 = vld [vmem:[#allocation6 + $0xe0] sm:$0xff]
    %v183 = vld [vmem:[#allocation6 + $0xe8] sm:$0xff]
    %v184 = vld [vmem:[#allocation6 + $0xf0] sm:$0xff]
    %v185 = vld [vmem:[#allocation6 + $0xf8] sm:$0xff]
    %v186 = vld [vmem:[#allocation6 + $0x100] sm:$0xff]
    %v187 = vld [vmem:[#allocation6 + $0x108] sm:$0xff]
    %v188 = vld [vmem:[#allocation6 + $0x110] sm:$0xff]
    %v189 = vld [vmem:[#allocation6 + $0x118] sm:$0xff]
    %v190 = vld [vmem:[#allocation6 + $0x120] sm:$0xff]
    %v191 = vld [vmem:[#allocation6 + $0x128] sm:$0xff]
    %v192 = vld [vmem:[#allocation6 + $0x130] sm:$0xff]
    %v193 = vld [vmem:[#allocation6 + $0x138] sm:$0xff]
    %v194 = vld [vmem:[#allocation6 + $0x140] sm:$0xff]
    %v195 = vld [vmem:[#allocation6 + $0x148] sm:$0xff]
    %v196 = vld [vmem:[#allocation6 + $0x150] sm:$0xff]
    %v197 = vld [vmem:[#allocation6 + $0x158] sm:$0xff]
    %v198 = vld [vmem:[#allocation6 + $0x160] sm:$0xff]
    %v199 = vld [vmem:[#allocation6 + $0x168] sm:$0xff]
    %v200 = vld [vmem:[#allocation6 + $0x170] sm:$0xff]
    %v201 = vld [vmem:[#allocation6 + $0x178] sm:$0xff]
    %v202 = vld [vmem:[#allocation6 + $0x180] sm:$0xff]
    %v203 = vld [vmem:[#allocation6 + $0x188] sm:$0xff]
    %v204 = vld [vmem:[#allocation6 + $0x190] sm:$0xff]
    %v205 = vld [vmem:[#allocation6 + $0x198] sm:$0xff]
    %v206 = vld [vmem:[#allocation6 + $0x1a0] sm:$0xff]
    %v207 = vld [vmem:[#allocation6 + $0x1a8] sm:$0xff]
    %v208 = vld [vmem:[#allocation6 + $0x1b0] sm:$0xff]
    %v209 = vld [vmem:[#allocation6 + $0x1b8] sm:$0xff]
    %v210 = vld [vmem:[#allocation6 + $0x1c0] sm:$0xff]
    %v211 = vld [vmem:[#allocation6 + $0x1c8] sm:$0xff]
    %v212 = vld [vmem:[#allocation6 + $0x1d0] sm:$0xff]
    %v213 = vld [vmem:[#allocation6 + $0x1d8] sm:$0xff]
    %v214 = vld [vmem:[#allocation6 + $0x1e0] sm:$0xff]
    %v215 = vld [vmem:[#allocation6 + $0x1e8] sm:$0xff]
    %v216 = vld [vmem:[#allocation6 + $0x1f0] sm:$0xff]
    %v217 = vld [vmem:[#allocation6 + $0x1f8] sm:$0xff]
    %v282 = vunpack.c.l.b16 %v154
    %v283 = vunpack.c.h.b16 %v154
    %v284 = vunpack.c.l.b16 %v155
    %v285 = vunpack.c.h.b16 %v155
    %v286 = vunpack.c.l.b16 %v156
    %v287 = vunpack.c.h.b16 %v156
    %v288 = vunpack.c.l.b16 %v157
    %v289 = vunpack.c.h.b16 %v157
    %v290 = vunpack.c.l.b16 %v158
    %v291 = vunpack.c.h.b16 %v158
    %v292 = vunpack.c.l.b16 %v159
    %v293 = vunpack.c.h.b16 %v159
    %v294 = vunpack.c.l.b16 %v160
    %v295 = vunpack.c.h.b16 %v160
    %v296 = vunpack.c.l.b16 %v161
    %v297 = vunpack.c.h.b16 %v161
    %v298 = vunpack.c.l.b16 %v162
    %v299 = vunpack.c.h.b16 %v162
    %v300 = vunpack.c.l.b16 %v163
    %v301 = vunpack.c.h.b16 %v163
    %v302 = vunpack.c.l.b16 %v164
    %v303 = vunpack.c.h.b16 %v164
    %v304 = vunpack.c.l.b16 %v165
    %v305 = vunpack.c.h.b16 %v165
    %v306 = vunpack.c.l.b16 %v166
    %v307 = vunpack.c.h.b16 %v166
    %v308 = vunpack.c.l.b16 %v167
    %v309 = vunpack.c.h.b16 %v167
    %v310 = vunpack.c.l.b16 %v168
    %v311 = vunpack.c.h.b16 %v168
    %v312 = vunpack.c.l.b16 %v169
    %v313 = vunpack.c.h.b16 %v169
    %v314 = vunpack.c.l.b16 %v170
    %v315 = vunpack.c.h.b16 %v170
    %v316 = vunpack.c.l.b16 %v171
    %v317 = vunpack.c.h.b16 %v171
    %v318 = vunpack.c.l.b16 %v172
    %v319 = vunpack.c.h.b16 %v172
    %v320 = vunpack.c.l.b16 %v173
    %v321 = vunpack.c.h.b16 %v173
    %v322 = vunpack.c.l.b16 %v174
    %v323 = vunpack.c.h.b16 %v174
    %v324 = vunpack.c.l.b16 %v175
    %v325 = vunpack.c.h.b16 %v175
    %v326 = vunpack.c.l.b16 %v176
    %v327 = vunpack.c.h.b16 %v176
    %v328 = vunpack.c.l.b16 %v177
    %v329 = vunpack.c.h.b16 %v177
    %v330 = vunpack.c.l.b16 %v178
    %v331 = vunpack.c.h.b16 %v178
    %v332 = vunpack.c.l.b16 %v179
    %v333 = vunpack.c.h.b16 %v179
    %v334 = vunpack.c.l.b16 %v180
    %v335 = vunpack.c.h.b16 %v180
    %v336 = vunpack.c.l.b16 %v181
    %v337 = vunpack.c.h.b16 %v181
    %v338 = vunpack.c.l.b16 %v182
    %v339 = vunpack.c.h.b16 %v182
    %v340 = vunpack.c.l.b16 %v183
    %v341 = vunpack.c.h.b16 %v183
    %v342 = vunpack.c.l.b16 %v184
    %v343 = vunpack.c.h.b16 %v184
    %v344 = vunpack.c.l.b16 %v185
    %v345 = vunpack.c.h.b16 %v185
    %v346 = vunpack.c.l.b16 %v186
    %v347 = vunpack.c.h.b16 %v186
    %v348 = vunpack.c.l.b16 %v187
    %v349 = vunpack.c.h.b16 %v187
    %v350 = vunpack.c.l.b16 %v188
    %v351 = vunpack.c.h.b16 %v188
    %v352 = vunpack.c.l.b16 %v189
    %v353 = vunpack.c.h.b16 %v189
    %v354 = vunpack.c.l.b16 %v190
    %v355 = vunpack.c.h.b16 %v190
    %v356 = vunpack.c.l.b16 %v191
    %v357 = vunpack.c.h.b16 %v191
    %v358 = vunpack.c.l.b16 %v192
    %v359 = vunpack.c.h.b16 %v192
    %v360 = vunpack.c.l.b16 %v193
    %v361 = vunpack.c.h.b16 %v193
    %v362 = vunpack.c.l.b16 %v194
    %v363 = vunpack.c.h.b16 %v194
    %v364 = vunpack.c.l.b16 %v195
    %v365 = vunpack.c.h.b16 %v195
    %v366 = vunpack.c.l.b16 %v196
    %v367 = vunpack.c.h.b16 %v196
    %v368 = vunpack.c.l.b16 %v197
    %v369 = vunpack.c.h.b16 %v197
    %v370 = vunpack.c.l.b16 %v198
    %v371 = vunpack.c.h.b16 %v198
    %v372 = vunpack.c.l.b16 %v199
    %v373 = vunpack.c.h.b16 %v199
    %v374 = vunpack.c.l.b16 %v200
    %v375 = vunpack.c.h.b16 %v200
    %v376 = vunpack.c.l.b16 %v201
    %v377 = vunpack.c.h.b16 %v201
    %v378 = vunpack.c.l.b16 %v202
    %v379 = vunpack.c.h.b16 %v202
    %v380 = vunpack.c.l.b16 %v203
    %v381 = vunpack.c.h.b16 %v203
    %v382 = vunpack.c.l.b16 %v204
    %v383 = vunpack.c.h.b16 %v204
    %v384 = vunpack.c.l.b16 %v205
    %v385 = vunpack.c.h.b16 %v205
    %v386 = vunpack.c.l.b16 %v206
    %v387 = vunpack.c.h.b16 %v206
    %v388 = vunpack.c.l.b16 %v207
    %v389 = vunpack.c.h.b16 %v207
    %v390 = vunpack.c.l.b16 %v208
    %v391 = vunpack.c.h.b16 %v208
    %v392 = vunpack.c.l.b16 %v209
    %v393 = vunpack.c.h.b16 %v209
    %v394 = vunpack.c.l.b16 %v210
    %v395 = vunpack.c.h.b16 %v210
    %v396 = vunpack.c.l.b16 %v211
    %v397 = vunpack.c.h.b16 %v211
    %v398 = vunpack.c.l.b16 %v212
    %v399 = vunpack.c.h.b16 %v212
    %v400 = vunpack.c.l.b16 %v213
    %v401 = vunpack.c.h.b16 %v213
    %v402 = vunpack.c.l.b16 %v214
    %v403 = vunpack.c.h.b16 %v214
    %v404 = vunpack.c.l.b16 %v215
    %v405 = vunpack.c.h.b16 %v215
    %v406 = vunpack.c.l.b16 %v216
    %v407 = vunpack.c.h.b16 %v216
    %v408 = vunpack.c.l.b16 %v217
    %v409 = vunpack.c.h.b16 %v217
    %v410 = vpack.c.b16 %v286, %v282
    %v411 = vpack.c.b16 %v287, %v283
    %v412 = vpack.c.b16 %v288, %v284
    %v413 = vpack.c.b16 %v289, %v285
    %v414 = vpack.c.b16 %v294, %v290
    %v415 = vpack.c.b16 %v295, %v291
    %v416 = vpack.c.b16 %v296, %v292
    %v417 = vpack.c.b16 %v297, %v293
    %v418 = vpack.c.b16 %v302, %v298
    %v419 = vpack.c.b16 %v303, %v299
    %v420 = vpack.c.b16 %v304, %v300
    %v421 = vpack.c.b16 %v305, %v301
    %v422 = vpack.c.b16 %v310, %v306
    %v423 = vpack.c.b16 %v311, %v307
    %v424 = vpack.c.b16 %v312, %v308
    %v425 = vpack.c.b16 %v313, %v309
    %v426 = vpack.c.b16 %v318, %v314
    %v427 = vpack.c.b16 %v319, %v315
    %v428 = vpack.c.b16 %v320, %v316
    %v429 = vpack.c.b16 %v321, %v317
    %v430 = vpack.c.b16 %v326, %v322
    %v431 = vpack.c.b16 %v327, %v323
    %v432 = vpack.c.b16 %v328, %v324
    %v433 = vpack.c.b16 %v329, %v325
    %v434 = vpack.c.b16 %v334, %v330
    %v435 = vpack.c.b16 %v335, %v331
    %v436 = vpack.c.b16 %v336, %v332
    %v437 = vpack.c.b16 %v337, %v333
    %v438 = vpack.c.b16 %v342, %v338
    %v439 = vpack.c.b16 %v343, %v339
    %v440 = vpack.c.b16 %v344, %v340
    %v441 = vpack.c.b16 %v345, %v341
    %v442 = vpack.c.b16 %v350, %v346
    %v443 = vpack.c.b16 %v351, %v347
    %v444 = vpack.c.b16 %v352, %v348
    %v445 = vpack.c.b16 %v353, %v349
    %v446 = vpack.c.b16 %v358, %v354
    %v447 = vpack.c.b16 %v359, %v355
    %v448 = vpack.c.b16 %v360, %v356
    %v449 = vpack.c.b16 %v361, %v357
    %v450 = vpack.c.b16 %v366, %v362
    %v451 = vpack.c.b16 %v367, %v363
    %v452 = vpack.c.b16 %v368, %v364
    %v453 = vpack.c.b16 %v369, %v365
    %v454 = vpack.c.b16 %v374, %v370
    %v455 = vpack.c.b16 %v375, %v371
    %v456 = vpack.c.b16 %v376, %v372
    %v457 = vpack.c.b16 %v377, %v373
    %v458 = vpack.c.b16 %v382, %v378
    %v459 = vpack.c.b16 %v383, %v379
    %v460 = vpack.c.b16 %v384, %v380
    %v461 = vpack.c.b16 %v385, %v381
    %v462 = vpack.c.b16 %v390, %v386
    %v463 = vpack.c.b16 %v391, %v387
    %v464 = vpack.c.b16 %v392, %v388
    %v465 = vpack.c.b16 %v393, %v389
    %v466 = vpack.c.b16 %v398, %v394
    %v467 = vpack.c.b16 %v399, %v395
    %v468 = vpack.c.b16 %v400, %v396
    %v469 = vpack.c.b16 %v401, %v397
    %v470 = vpack.c.b16 %v406, %v402
    %v471 = vpack.c.b16 %v407, %v403
    %v472 = vpack.c.b16 %v408, %v404
    %v473 = vpack.c.b16 %v409, %v405
    %538 = vmatprep.subr.bf16.mxu0 %v439
    %539 = vmatpush1.bf16.msra.mxu0 %v438
    %540 = vmatprep.subr.bf16.mxu0 %v435
    %541 = vmatpush1.bf16.msra.mxu0 %v434
    %542 = vmatprep.subr.bf16.mxu0 %v431
    %543 = vmatpush1.bf16.msra.mxu0 %v430
    %544 = vmatprep.subr.bf16.mxu0 %v427
    %545 = vmatpush1.bf16.msra.mxu0 %v426
    %546 = vmatprep.subr.bf16.mxu0 %v423
    %547 = vmatpush1.bf16.msra.mxu0 %v422
    %548 = vmatprep.subr.bf16.mxu0 %v419
    %549 = vmatpush1.bf16.msra.mxu0 %v418
    %550 = vmatprep.subr.bf16.mxu0 %v415
    %551 = vmatpush1.bf16.msra.mxu0 %v414
    %552 = vmatprep.subr.bf16.mxu0 %v411
    %553 = vmatpush1.bf16.msra.mxu0 %v410
    %554 = vmatprep.subr.bf16.mxu0 %v471
    %555 = vmatpush2.bf16.msra.mxu0 %v470
    %556 = vmatprep.subr.bf16.mxu0 %v467
    %557 = vmatpush2.bf16.msra.mxu0 %v466
    %558 = vmatprep.subr.bf16.mxu0 %v463
    %559 = vmatpush2.bf16.msra.mxu0 %v462
    %560 = vmatprep.subr.bf16.mxu0 %v459
    %561 = vmatpush2.bf16.msra.mxu0 %v458
    %562 = vmatprep.subr.bf16.mxu0 %v455
    %563 = vmatpush2.bf16.msra.mxu0 %v454
    %564 = vmatprep.subr.bf16.mxu0 %v451
    %565 = vmatpush2.bf16.msra.mxu0 %v450
    %566 = vmatprep.subr.bf16.mxu0 %v447
    %567 = vmatpush2.bf16.msra.mxu0 %v446
    %568 = vmatprep.subr.bf16.mxu0 %v443
    %569 = vmatpush2.bf16.msra.mxu0 %v442
    %570 = vmatprep.mubr.bf16.mxu0 %v129
    %571 = vmatmul.mubr.bf16.gmra.mxu0 %v128
    %v572 = vpop.f32.mrf.mxu0
    %v573 = vadd.f32 0.0, %v572
    %v574 = vpop.f32.mrf.mxu0
    %v575 = vadd.f32 0.0, %v574
    %v576 = vpop.f32.mrf.mxu0
    %v577 = vadd.f32 0.0, %v576
    %v578 = vpop.f32.mrf.mxu0
    %v579 = vadd.f32 0.0, %v578
    %580 = vmatprep.mubr.bf16.mxu0 %v131
    %581 = vmatmul.mubr.bf16.gmra.mxu0 %v130
    %v582 = vpop.f32.mrf.mxu0
    %v583 = vadd.f32 0.0, %v582
    %v584 = vpop.f32.mrf.mxu0
    %v585 = vadd.f32 0.0, %v584
    %v586 = vpop.f32.mrf.mxu0
    %v587 = vadd.f32 0.0, %v586
    %v588 = vpop.f32.mrf.mxu0
    %v589 = vadd.f32 0.0, %v588
    %590 = vmatprep.mubr.bf16.mxu0 %v133
    %591 = vmatmul.mubr.bf16.gmra.mxu0 %v132
    %v592 = vpop.f32.mrf.mxu0
    %v593 = vadd.f32 0.0, %v592
    %v594 = vpop.f32.mrf.mxu0
    %v595 = vadd.f32 0.0, %v594
    %v596 = vpop.f32.mrf.mxu0
    %v597 = vpop.f32.mrf.mxu0
    %598 = vdwg.mxu0
    %599 = vmatprep.subr.bf16.mxu0 %v441
    %600 = vmatpush1.bf16.msra.mxu0 %v440
    %601 = vmatprep.subr.bf16.mxu0 %v437
    %602 = vmatpush1.bf16.msra.mxu0 %v436
    %603 = vmatprep.subr.bf16.mxu0 %v433
    %604 = vmatpush1.bf16.msra.mxu0 %v432
    %605 = vmatprep.subr.bf16.mxu0 %v429
    %606 = vmatpush1.bf16.msra.mxu0 %v428
    %607 = vmatprep.subr.bf16.mxu0 %v425
    %608 = vmatpush1.bf16.msra.mxu0 %v424
    %609 = vmatprep.subr.bf16.mxu0 %v421
    %610 = vmatpush1.bf16.msra.mxu0 %v420
    %611 = vmatprep.subr.bf16.mxu0 %v417
    %612 = vmatpush1.bf16.msra.mxu0 %v416
    %613 = vmatprep.subr.bf16.mxu0 %v413
    %614 = vmatpush1.bf16.msra.mxu0 %v412
    %615 = vmatprep.subr.bf16.mxu0 %v473
    %616 = vmatpush2.bf16.msra.mxu0 %v472
    %617 = vmatprep.subr.bf16.mxu0 %v469
    %618 = vmatpush2.bf16.msra.mxu0 %v468
    %619 = vmatprep.subr.bf16.mxu0 %v465
    %620 = vmatpush2.bf16.msra.mxu0 %v464
    %621 = vmatprep.subr.bf16.mxu0 %v461
    %622 = vmatpush2.bf16.msra.mxu0 %v460
    %623 = vmatprep.subr.bf16.mxu0 %v457
    %624 = vmatpush2.bf16.msra.mxu0 %v456
    %625 = vmatprep.subr.bf16.mxu0 %v453
    %626 = vmatpush2.bf16.msra.mxu0 %v452
    %627 = vmatprep.subr.bf16.mxu0 %v449
    %628 = vmatpush2.bf16.msra.mxu0 %v448
    %629 = vmatprep.subr.bf16.mxu0 %v445
    %630 = vmatpush2.bf16.msra.mxu0 %v444
    %631 = vmatprep.mubr.bf16.mxu0 %v129
    %632 = vmatmul.mubr.bf16.gmra.mxu0 %v128
    %v633 = vpop.f32.mrf.mxu0
    %v634 = vadd.f32 0.0, %v633
    %v635 = vpop.f32.mrf.mxu0
    %v636 = vadd.f32 0.0, %v635
    %v637 = vpop.f32.mrf.mxu0
    %v638 = vadd.f32 0.0, %v637
    %v639 = vpop.f32.mrf.mxu0
    %v640 = vadd.f32 0.0, %v639
    %641 = vmatprep.mubr.bf16.mxu0 %v131
    %642 = vmatmul.mubr.bf16.gmra.mxu0 %v130
    %v643 = vpop.f32.mrf.mxu0
    %v644 = vadd.f32 0.0, %v643
    %v645 = vpop.f32.mrf.mxu0
    %v646 = vadd.f32 0.0, %v645
    %v647 = vpop.f32.mrf.mxu0
    %v648 = vadd.f32 0.0, %v647
    %v649 = vpop.f32.mrf.mxu0
    %v650 = vadd.f32 0.0, %v649
    %651 = vmatprep.mubr.bf16.mxu0 %v133
    %652 = vmatmul.mubr.bf16.gmra.mxu0 %v132
    %v653 = vpop.f32.mrf.mxu0
    %v654 = vadd.f32 0.0, %v653
    %v655 = vpop.f32.mrf.mxu0
    %v656 = vadd.f32 0.0, %v655
    %v657 = vpop.f32.mrf.mxu0
    %v658 = vpop.f32.mrf.mxu0
    %659 = vdwg.mxu0
    %v660 = vadd.f32 %v134, %v573
    %v661 = vadd.f32 %v135, %v575
    %v662 = vadd.f32 %v136, %v634
    %v663 = vadd.f32 %v137, %v636
    %v664 = vadd.f32 %v138, %v577
    %v665 = vadd.f32 %v139, %v579
    %v666 = vadd.f32 %v140, %v638
    %v667 = vadd.f32 %v141, %v640
    %v668 = vadd.f32 %v142, %v583
    %v669 = vadd.f32 %v143, %v585
    %v670 = vadd.f32 %v144, %v644
    %v671 = vadd.f32 %v145, %v646
    %v672 = vadd.f32 %v146, %v587
    %v673 = vadd.f32 %v147, %v589
    %v674 = vadd.f32 %v148, %v648
    %v675 = vadd.f32 %v149, %v650
    %v676 = vadd.f32 %v150, %v593
    %v677 = vadd.f32 %v151, %v595
    %v678 = vadd.f32 %v152, %v654
    %v679 = vadd.f32 %v153, %v656
    %680 = vst [vmem:[#allocation2] sm:$0xff] %v660
    %681 = vst [vmem:[#allocation2 + $0x8] sm:$0xff] %v661
    %682 = vst [vmem:[#allocation2 + $0x10] sm:$0xff] %v662
    %683 = vst [vmem:[#allocation2 + $0x18] sm:$0xff] %v663
    %684 = vst [vmem:[#allocation2 + $0x20] sm:$0xff] %v664
    %685 = vst [vmem:[#allocation2 + $0x28] sm:$0xff] %v665
    %686 = vst [vmem:[#allocation2 + $0x30] sm:$0xff] %v666
    %687 = vst [vmem:[#allocation2 + $0x38] sm:$0xff] %v667
    %688 = vst [vmem:[#allocation2 + $0x40] sm:$0xff] %v668
    %689 = vst [vmem:[#allocation2 + $0x48] sm:$0xff] %v669
    %690 = vst [vmem:[#allocation2 + $0x50] sm:$0xff] %v670
    %691 = vst [vmem:[#allocation2 + $0x58] sm:$0xff] %v671
    %692 = vst [vmem:[#allocation2 + $0x60] sm:$0xff] %v672
    %693 = vst [vmem:[#allocation2 + $0x68] sm:$0xff] %v673
    %694 = vst [vmem:[#allocation2 + $0x70] sm:$0xff] %v674
    %695 = vst [vmem:[#allocation2 + $0x78] sm:$0xff] %v675
    %696 = vst [vmem:[#allocation2 + $0x80] sm:$0xff] %v676
    %697 = vst [vmem:[#allocation2 + $0x88] sm:$0xff] %v677
    %698 = vst [vmem:[#allocation2 + $0x90] sm:$0xff] %v678
    %699 = vst [vmem:[#allocation2 + $0x98] sm:$0xff] %v679
    // Predicated region
    $region54: #{tpu_custom_call.1} parent=1 // pred_check
      %p700 = pneg %p94
    $region55: #{tpu_custom_call.1} parent=1 // pred_check_branch
      %702 = sbr.rel (%p700) target = $region57
    $region56: #{tpu_custom_call.1} parent=1 // pred_region
      %v703 = vld [vmem:[#allocation2] sm:$0xff]
      %v704 = vld [vmem:[#allocation2 + $0x8] sm:$0xff]
      %v705 = vld [vmem:[#allocation2 + $0x10] sm:$0xff]
      %v706 = vld [vmem:[#allocation2 + $0x18] sm:$0xff]
      %v707 = vld [vmem:[#allocation2 + $0x20] sm:$0xff]
      %v708 = vld [vmem:[#allocation2 + $0x28] sm:$0xff]
      %v709 = vld [vmem:[#allocation2 + $0x30] sm:$0xff]
      %v710 = vld [vmem:[#allocation2 + $0x38] sm:$0xff]
      %v711 = vld [vmem:[#allocation2 + $0x40] sm:$0xff]
      %v712 = vld [vmem:[#allocation2 + $0x48] sm:$0xff]
      %v713 = vld [vmem:[#allocation2 + $0x50] sm:$0xff]
      %v714 = vld [vmem:[#allocation2 + $0x58] sm:$0xff]
      %v715 = vld [vmem:[#allocation2 + $0x60] sm:$0xff]
      %v716 = vld [vmem:[#allocation2 + $0x68] sm:$0xff]
      %v717 = vld [vmem:[#allocation2 + $0x70] sm:$0xff]
      %v718 = vld [vmem:[#allocation2 + $0x78] sm:$0xff]
      %v719 = vld [vmem:[#allocation2 + $0x80] sm:$0xff]
      %v720 = vld [vmem:[#allocation2 + $0x88] sm:$0xff]
      %v721 = vld [vmem:[#allocation2 + $0x90] sm:$0xff]
      %v722 = vld [vmem:[#allocation2 + $0x98] sm:$0xff]
      %v723 = vld [vmem:[#allocation8] sm:$0xf]
      %v725 = vlaneseq
      %v726 = vshrl.u32 %v725, 7
      %v727 = vsub.s32 0, %v726
      %v728 = vrot.slane %v723, %v727
      %v729 = vlaneseq
      %v730 = vshrl.u32 %v729, 7
      %v731 = vsub.s32 1, %v730
      %v732 = vrot.slane %v723, %v731
      %v733 = vlaneseq
      %v734 = vshrl.u32 %v733, 7
      %v735 = vsub.s32 2, %v734
      %v736 = vrot.slane %v723, %v735
      %v737 = vlaneseq
      %v738 = vshrl.u32 %v737, 7
      %v739 = vsub.s32 3, %v738
      %v740 = vrot.slane %v723, %v739
      %v745 = vadd.f32 %v703, %v728
      %v746 = vadd.f32 %v704, %v732
      %v747 = vadd.f32 %v705, %v736
      %v748 = vadd.f32 %v706, %v740
      %v749 = vadd.f32 %v707, %v728
      %v750 = vadd.f32 %v708, %v732
      %v751 = vadd.f32 %v709, %v736
      %v752 = vadd.f32 %v710, %v740
      %v753 = vadd.f32 %v711, %v728
      %v754 = vadd.f32 %v712, %v732
      %v755 = vadd.f32 %v713, %v736
      %v756 = vadd.f32 %v714, %v740
      %v757 = vadd.f32 %v715, %v728
      %v758 = vadd.f32 %v716, %v732
      %v759 = vadd.f32 %v717, %v736
      %v760 = vadd.f32 %v718, %v740
      %v761 = vadd.f32 %v719, %v728
      %v762 = vadd.f32 %v720, %v732
      %v763 = vadd.f32 %v721, %v736
      %v764 = vadd.f32 %v722, %v740
      %v765 = vmax.f32 %v745, 0.0
      %v766 = vmax.f32 %v746, 0.0
      %v767 = vmax.f32 %v747, 0.0
      %v768 = vmax.f32 %v748, 0.0
      %v769 = vmax.f32 %v749, 0.0
      %v770 = vmax.f32 %v750, 0.0
      %v771 = vmax.f32 %v751, 0.0
      %v772 = vmax.f32 %v752, 0.0
      %v773 = vmax.f32 %v753, 0.0
      %v774 = vmax.f32 %v754, 0.0
      %v775 = vmax.f32 %v755, 0.0
      %v776 = vmax.f32 %v756, 0.0
      %v777 = vmax.f32 %v757, 0.0
      %v778 = vmax.f32 %v758, 0.0
      %v779 = vmax.f32 %v759, 0.0
      %v780 = vmax.f32 %v760, 0.0
      %v781 = vmax.f32 %v761, 0.0
      %v782 = vmax.f32 %v762, 0.0
      %v783 = vmax.f32 %v763, 0.0
      %v784 = vmax.f32 %v764, 0.0
      %v785 = vpack.c.bf16 %v769, %v765
      %v786 = vpack.c.bf16 %v770, %v766
      %v787 = vpack.c.bf16 %v771, %v767
      %v788 = vpack.c.bf16 %v772, %v768
      %v789 = vpack.c.bf16 %v777, %v773
      %v790 = vpack.c.bf16 %v778, %v774
      %v791 = vpack.c.bf16 %v779, %v775
      %v792 = vpack.c.bf16 %v780, %v776
      %v793 = vpack.c.bf16 %v781, %v781
      %v794 = vpack.c.bf16 %v782, %v782
      %v795 = vpack.c.bf16 %v783, %v783
      %v796 = vpack.c.bf16 %v784, %v784
      %v797 = vld [vmem:[#allocation9] sm:$0xf]
      %v798 = vld [vmem:[#allocation9 + $0x4] sm:$0xf]
      %v799 = vld [vmem:[#allocation9 + $0x8] sm:$0xf]
      %v800 = vld [vmem:[#allocation9 + $0xc] sm:$0xf]
      %v801 = vld [vmem:[#allocation9 + $0x10] sm:$0xf]
      %v802 = vld [vmem:[#allocation9 + $0x14] sm:$0xf]
      %v803 = vld [vmem:[#allocation9 + $0x18] sm:$0xf]
      %v804 = vld [vmem:[#allocation9 + $0x1c] sm:$0xf]
      %v805 = vld [vmem:[#allocation9 + $0x20] sm:$0xf]
      %v806 = vld [vmem:[#allocation9 + $0x24] sm:$0xf]
      %v807 = vld [vmem:[#allocation9 + $0x28] sm:$0xf]
      %v808 = vld [vmem:[#allocation9 + $0x2c] sm:$0xf]
      %v809 = vld [vmem:[#allocation9 + $0x30] sm:$0xf]
      %v810 = vld [vmem:[#allocation9 + $0x34] sm:$0xf]
      %v811 = vld [vmem:[#allocation9 + $0x38] sm:$0xf]
      %v812 = vld [vmem:[#allocation9 + $0x3c] sm:$0xf]
      %v813 = vld [vmem:[#allocation9 + $0x40] sm:$0xf]
      %v814 = vld [vmem:[#allocation9 + $0x44] sm:$0xf]
      %v815 = vld [vmem:[#allocation9 + $0x48] sm:$0xf]
      %v816 = vld [vmem:[#allocation9 + $0x4c] sm:$0xf]
      %v817 = vld [vmem:[#allocation9 + $0x50] sm:$0xf]
      %v818 = vld [vmem:[#allocation9 + $0x54] sm:$0xf]
      %v819 = vld [vmem:[#allocation9 + $0x58] sm:$0xf]
      %v820 = vld [vmem:[#allocation9 + $0x5c] sm:$0xf]
      %v821 = vld [vmem:[#allocation9 + $0x60] sm:$0xf]
      %v822 = vld [vmem:[#allocation9 + $0x64] sm:$0xf]
      %v823 = vld [vmem:[#allocation9 + $0x68] sm:$0xf]
      %v824 = vld [vmem:[#allocation9 + $0x6c] sm:$0xf]
      %v825 = vld [vmem:[#allocation9 + $0x70] sm:$0xf]
      %v826 = vld [vmem:[#allocation9 + $0x74] sm:$0xf]
      %v827 = vld [vmem:[#allocation9 + $0x78] sm:$0xf]
      %v828 = vld [vmem:[#allocation9 + $0x7c] sm:$0xf]
      %v829 = vld [vmem:[#allocation9 + $0x80] sm:$0xf]
      %v830 = vld [vmem:[#allocation9 + $0x84] sm:$0xf]
      %v831 = vld [vmem:[#allocation9 + $0x88] sm:$0xf]
      %v832 = vld [vmem:[#allocation9 + $0x8c] sm:$0xf]
      %v833 = vld [vmem:[#allocation9 + $0x90] sm:$0xf]
      %v834 = vld [vmem:[#allocation9 + $0x94] sm:$0xf]
      %v835 = vld [vmem:[#allocation9 + $0x98] sm:$0xf]
      %v836 = vld [vmem:[#allocation9 + $0x9c] sm:$0xf]
      %v837 = vld [vmem:[#allocation9 + $0xa0] sm:$0xf]
      %v838 = vld [vmem:[#allocation9 + $0xa4] sm:$0xf]
      %v839 = vld [vmem:[#allocation9 + $0xa8] sm:$0xf]
      %v840 = vld [vmem:[#allocation9 + $0xac] sm:$0xf]
      %v841 = vld [vmem:[#allocation9 + $0xb0] sm:$0xf]
      %v842 = vld [vmem:[#allocation9 + $0xb4] sm:$0xf]
      %v843 = vld [vmem:[#allocation9 + $0xb8] sm:$0xf]
      %v844 = vld [vmem:[#allocation9 + $0xbc] sm:$0xf]
      %v845 = vld [vmem:[#allocation9 + $0xc0] sm:$0xf]
      %v846 = vld [vmem:[#allocation9 + $0xc4] sm:$0xf]
      %v847 = vld [vmem:[#allocation9 + $0xc8] sm:$0xf]
      %v848 = vld [vmem:[#allocation9 + $0xcc] sm:$0xf]
      %v849 = vld [vmem:[#allocation9 + $0xd0] sm:$0xf]
      %v850 = vld [vmem:[#allocation9 + $0xd4] sm:$0xf]
      %v851 = vld [vmem:[#allocation9 + $0xd8] sm:$0xf]
      %v852 = vld [vmem:[#allocation9 + $0xdc] sm:$0xf]
      %v853 = vld [vmem:[#allocation9 + $0xe0] sm:$0xf]
      %v854 = vld [vmem:[#allocation9 + $0xe4] sm:$0xf]
      %v855 = vld [vmem:[#allocation9 + $0xe8] sm:$0xf]
      %v856 = vld [vmem:[#allocation9 + $0xec] sm:$0xf]
      %v857 = vld [vmem:[#allocation9 + $0xf0] sm:$0xf]
      %v858 = vld [vmem:[#allocation9 + $0xf4] sm:$0xf]
      %v859 = vld [vmem:[#allocation9 + $0xf8] sm:$0xf]
      %v860 = vld [vmem:[#allocation9 + $0xfc] sm:$0xf]
      %v861 = vld [vmem:[%s4] sm:$0x1]
      %v863 = vlaneseq
      %v864 = vshrl.u32 %v863, 7
      %v865 = vsub.s32 0, %v864
      %v866 = vrot.slane %v861, %v865
      %v932 = vunpack.c.l.b16 %v797
      %v933 = vunpack.c.l.b16 %v798
      %v934 = vunpack.c.l.b16 %v799
      %v935 = vunpack.c.l.b16 %v800
      %v936 = vunpack.c.l.b16 %v801
      %v937 = vunpack.c.l.b16 %v802
      %v938 = vunpack.c.l.b16 %v803
      %v939 = vunpack.c.l.b16 %v804
      %v940 = vunpack.c.l.b16 %v805
      %v941 = vunpack.c.l.b16 %v806
      %v942 = vunpack.c.l.b16 %v807
      %v943 = vunpack.c.l.b16 %v808
      %v944 = vunpack.c.l.b16 %v809
      %v945 = vunpack.c.l.b16 %v810
      %v946 = vunpack.c.l.b16 %v811
      %v947 = vunpack.c.l.b16 %v812
      %v948 = vunpack.c.l.b16 %v813
      %v949 = vunpack.c.l.b16 %v814
      %v950 = vunpack.c.l.b16 %v815
      %v951 = vunpack.c.l.b16 %v816
      %v952 = vunpack.c.l.b16 %v817
      %v953 = vunpack.c.l.b16 %v818
      %v954 = vunpack.c.l.b16 %v819
      %v955 = vunpack.c.l.b16 %v820
      %v956 = vunpack.c.l.b16 %v821
      %v957 = vunpack.c.l.b16 %v822
      %v958 = vunpack.c.l.b16 %v823
      %v959 = vunpack.c.l.b16 %v824
      %v960 = vunpack.c.l.b16 %v825
      %v961 = vunpack.c.l.b16 %v826
      %v962 = vunpack.c.l.b16 %v827
      %v963 = vunpack.c.l.b16 %v828
      %v964 = vunpack.c.l.b16 %v829
      %v965 = vunpack.c.l.b16 %v830
      %v966 = vunpack.c.l.b16 %v831
      %v967 = vunpack.c.l.b16 %v832
      %v968 = vunpack.c.l.b16 %v833
      %v969 = vunpack.c.l.b16 %v834
      %v970 = vunpack.c.l.b16 %v835
      %v971 = vunpack.c.l.b16 %v836
      %v972 = vunpack.c.l.b16 %v837
      %v973 = vunpack.c.l.b16 %v838
      %v974 = vunpack.c.l.b16 %v839
      %v975 = vunpack.c.l.b16 %v840
      %v976 = vunpack.c.l.b16 %v841
      %v977 = vunpack.c.l.b16 %v842
      %v978 = vunpack.c.l.b16 %v843
      %v979 = vunpack.c.l.b16 %v844
      %v980 = vunpack.c.l.b16 %v845
      %v981 = vunpack.c.l.b16 %v846
      %v982 = vunpack.c.l.b16 %v847
      %v983 = vunpack.c.l.b16 %v848
      %v984 = vunpack.c.l.b16 %v849
      %v985 = vunpack.c.l.b16 %v850
      %v986 = vunpack.c.l.b16 %v851
      %v987 = vunpack.c.l.b16 %v852
      %v988 = vunpack.c.l.b16 %v853
      %v989 = vunpack.c.l.b16 %v854
      %v990 = vunpack.c.l.b16 %v855
      %v991 = vunpack.c.l.b16 %v856
      %v992 = vunpack.c.l.b16 %v857
      %v993 = vunpack.c.l.b16 %v858
      %v994 = vunpack.c.l.b16 %v859
      %v995 = vunpack.c.l.b16 %v860
      %v996 = vpack.c.b16 %v933, %v932
      %v997 = vpack.c.b16 %v935, %v934
      %v998 = vpack.c.b16 %v937, %v936
      %v999 = vpack.c.b16 %v939, %v938
      %v1000 = vpack.c.b16 %v941, %v940
      %v1001 = vpack.c.b16 %v943, %v942
      %v1002 = vpack.c.b16 %v945, %v944
      %v1003 = vpack.c.b16 %v947, %v946
      %v1004 = vpack.c.b16 %v949, %v948
      %v1005 = vpack.c.b16 %v951, %v950
      %v1006 = vpack.c.b16 %v953, %v952
      %v1007 = vpack.c.b16 %v955, %v954
      %v1008 = vpack.c.b16 %v957, %v956
      %v1009 = vpack.c.b16 %v959, %v958
      %v1010 = vpack.c.b16 %v961, %v960
      %v1011 = vpack.c.b16 %v963, %v962
      %v1012 = vpack.c.b16 %v965, %v964
      %v1013 = vpack.c.b16 %v967, %v966
      %v1014 = vpack.c.b16 %v969, %v968
      %v1015 = vpack.c.b16 %v971, %v970
      %v1016 = vpack.c.b16 %v973, %v972
      %v1017 = vpack.c.b16 %v975, %v974
      %v1018 = vpack.c.b16 %v977, %v976
      %v1019 = vpack.c.b16 %v979, %v978
      %v1020 = vpack.c.b16 %v981, %v980
      %v1021 = vpack.c.b16 %v983, %v982
      %v1022 = vpack.c.b16 %v985, %v984
      %v1023 = vpack.c.b16 %v987, %v986
      %v1024 = vpack.c.b16 %v989, %v988
      %v1025 = vpack.c.b16 %v991, %v990
      %v1026 = vpack.c.b16 %v993, %v992
      %v1027 = vpack.c.b16 %v995, %v994
      %1060 = vmatprep.subr.bf16.mxu0 0
      %1061 = vmatpush1.bf16.msra.mxu0 %v1003
      %1062 = vmatprep.subr.bf16.mxu0 0
      %1063 = vmatpush1.bf16.msra.mxu0 %v1002
      %1064 = vmatprep.subr.bf16.mxu0 0
      %1065 = vmatpush1.bf16.msra.mxu0 %v1001
      %1066 = vmatprep.subr.bf16.mxu0 0
      %1067 = vmatpush1.bf16.msra.mxu0 %v1000
      %1068 = vmatprep.subr.bf16.mxu0 0
      %1069 = vmatpush1.bf16.msra.mxu0 %v999
      %1070 = vmatprep.subr.bf16.mxu0 0
      %1071 = vmatpush1.bf16.msra.mxu0 %v998
      %1072 = vmatprep.subr.bf16.mxu0 0
      %1073 = vmatpush1.bf16.msra.mxu0 %v997
      %1074 = vmatprep.subr.bf16.mxu0 0
      %1075 = vmatpush1.bf16.msra.mxu0 %v996
      %1076 = vmatprep.subr.bf16.mxu0 0
      %1077 = vmatpush2.bf16.msra.mxu0 %v1011
      %1078 = vmatprep.subr.bf16.mxu0 0
      %1079 = vmatpush2.bf16.msra.mxu0 %v1010
      %1080 = vmatprep.subr.bf16.mxu0 0
      %1081 = vmatpush2.bf16.msra.mxu0 %v1009
      %1082 = vmatprep.subr.bf16.mxu0 0
      %1083 = vmatpush2.bf16.msra.mxu0 %v1008
      %1084 = vmatprep.subr.bf16.mxu0 0
      %1085 = vmatpush2.bf16.msra.mxu0 %v1007
      %1086 = vmatprep.subr.bf16.mxu0 0
      %1087 = vmatpush2.bf16.msra.mxu0 %v1006
      %1088 = vmatprep.subr.bf16.mxu0 0
      %1089 = vmatpush2.bf16.msra.mxu0 %v1005
      %1090 = vmatprep.subr.bf16.mxu0 0
      %1091 = vmatpush2.bf16.msra.mxu0 %v1004
      %1092 = vmatprep.mubr.bf16.mxu0 %v786
      %1093 = vmatmul.mubr.bf16.gmra.mxu0 %v785
      %v1094 = vpop.f32.mrf.mxu0
      %v1095 = vadd.f32 %v866, %v1094
      %v1096 = vpop.f32.mrf.mxu0
      %v1097 = vpop.f32.mrf.mxu0
      %v1098 = vadd.f32 %v866, %v1097
      %v1099 = vpop.f32.mrf.mxu0
      %1100 = vmatprep.mubr.bf16.mxu0 %v790
      %1101 = vmatmul.mubr.bf16.gmra.mxu0 %v789
      %v1102 = vpop.f32.mrf.mxu0
      %v1103 = vadd.f32 %v866, %v1102
      %v1104 = vpop.f32.mrf.mxu0
      %v1105 = vpop.f32.mrf.mxu0
      %v1106 = vadd.f32 %v866, %v1105
      %v1107 = vpop.f32.mrf.mxu0
      %1108 = vmatprep.mubr.bf16.mxu0 %v794
      %1109 = vmatmul.mubr.bf16.gmra.mxu0 %v793
      %v1110 = vpop.f32.mrf.mxu0
      %v1111 = vadd.f32 %v866, %v1110
      %v1112 = vpop.f32.mrf.mxu0
      %v1113 = vpop.f32.mrf.mxu0
      %v1114 = vpop.f32.mrf.mxu0
      %1115 = vdwg.mxu0
      %1116 = vmatprep.subr.bf16.mxu0 0
      %1117 = vmatpush1.bf16.msra.mxu0 %v1019
      %1118 = vmatprep.subr.bf16.mxu0 0
      %1119 = vmatpush1.bf16.msra.mxu0 %v1018
      %1120 = vmatprep.subr.bf16.mxu0 0
      %1121 = vmatpush1.bf16.msra.mxu0 %v1017
      %1122 = vmatprep.subr.bf16.mxu0 0
      %1123 = vmatpush1.bf16.msra.mxu0 %v1016
      %1124 = vmatprep.subr.bf16.mxu0 0
      %1125 = vmatpush1.bf16.msra.mxu0 %v1015
      %1126 = vmatprep.subr.bf16.mxu0 0
      %1127 = vmatpush1.bf16.msra.mxu0 %v1014
      %1128 = vmatprep.subr.bf16.mxu0 0
      %1129 = vmatpush1.bf16.msra.mxu0 %v1013
      %1130 = vmatprep.subr.bf16.mxu0 0
      %1131 = vmatpush1.bf16.msra.mxu0 %v1012
      %1132 = vmatprep.subr.bf16.mxu0 0
      %1133 = vmatpush2.bf16.msra.mxu0 %v1027
      %1134 = vmatprep.subr.bf16.mxu0 0
      %1135 = vmatpush2.bf16.msra.mxu0 %v1026
      %1136 = vmatprep.subr.bf16.mxu0 0
      %1137 = vmatpush2.bf16.msra.mxu0 %v1025
      %1138 = vmatprep.subr.bf16.mxu0 0
      %1139 = vmatpush2.bf16.msra.mxu0 %v1024
      %1140 = vmatprep.subr.bf16.mxu0 0
      %1141 = vmatpush2.bf16.msra.mxu0 %v1023
      %1142 = vmatprep.subr.bf16.mxu0 0
      %1143 = vmatpush2.bf16.msra.mxu0 %v1022
      %1144 = vmatprep.subr.bf16.mxu0 0
      %1145 = vmatpush2.bf16.msra.mxu0 %v1021
      %1146 = vmatprep.subr.bf16.mxu0 0
      %1147 = vmatpush2.bf16.msra.mxu0 %v1020
      %1148 = vmatprep.mubr.bf16.mxu0 %v788
      %1149 = vmatmul.mubr.bf16.gmra.mxu0 %v787
      %v1150 = vpop.f32.mrf.mxu0
      %v1151 = vadd.f32 %v1095, %v1150
      %v1152 = vpop.f32.mrf.mxu0
      %v1153 = vpop.f32.mrf.mxu0
      %v1154 = vadd.f32 %v1098, %v1153
      %v1155 = vpop.f32.mrf.mxu0
      %1156 = vmatprep.mubr.bf16.mxu0 %v792
      %1157 = vmatmul.mubr.bf16.gmra.mxu0 %v791
      %v1158 = vpop.f32.mrf.mxu0
      %v1159 = vadd.f32 %v1103, %v1158
      %v1160 = vpop.f32.mrf.mxu0
      %v1161 = vpop.f32.mrf.mxu0
      %v1162 = vadd.f32 %v1106, %v1161
      %v1163 = vpop.f32.mrf.mxu0
      %1164 = vmatprep.mubr.bf16.mxu0 %v796
      %1165 = vmatmul.mubr.bf16.gmra.mxu0 %v795
      %v1166 = vpop.f32.mrf.mxu0
      %v1167 = vadd.f32 %v1111, %v1166
      %v1168 = vpop.f32.mrf.mxu0
      %v1169 = vpop.f32.mrf.mxu0
      %v1170 = vpop.f32.mrf.mxu0
      %1171 = vdwg.mxu0
      %v1172 = vmax.f32 %v1151, 0.0
      %v1173 = vmax.f32 %v1154, 0.0
      %v1174 = vmax.f32 %v1159, 0.0
      %v1175 = vmax.f32 %v1162, 0.0
      %v1176 = vmax.f32 %v1167, 0.0
      %v1177 = vpack.c.bf16 %v1173, %v1172
      %v1178 = vpack.c.bf16 %v1175, %v1174
      %v1179 = vpack.c.bf16 %v1176, %v1176
      %v1180 = vld [vmem:[#allocation11] sm:$0xf]
      %v1181 = vld [vmem:[#allocation11 + $0x4] sm:$0xf]
      %v1182 = vld [vmem:[#allocation11 + $0x8] sm:$0xf]
      %v1183 = vld [vmem:[#allocation11 + $0xc] sm:$0xf]
      %v1184 = vld [vmem:[#allocation11 + $0x10] sm:$0xf]
      %v1185 = vld [vmem:[#allocation11 + $0x14] sm:$0xf]
      %v1186 = vld [vmem:[#allocation11 + $0x18] sm:$0xf]
      %v1187 = vld [vmem:[#allocation11 + $0x1c] sm:$0xf]
      %v1188 = vld [vmem:[#allocation11 + $0x20] sm:$0xf]
      %v1189 = vld [vmem:[#allocation11 + $0x24] sm:$0xf]
      %v1190 = vld [vmem:[#allocation11 + $0x28] sm:$0xf]
      %v1191 = vld [vmem:[#allocation11 + $0x2c] sm:$0xf]
      %v1192 = vld [vmem:[#allocation11 + $0x30] sm:$0xf]
      %v1193 = vld [vmem:[#allocation11 + $0x34] sm:$0xf]
      %v1194 = vld [vmem:[#allocation11 + $0x38] sm:$0xf]
      %v1195 = vld [vmem:[#allocation11 + $0x3c] sm:$0xf]
      %v1196 = vld [vmem:[%s6] sm:$0x1]
      %v1198 = vlaneseq
      %v1199 = vshrl.u32 %v1198, 7
      %v1200 = vsub.s32 0, %v1199
      %v1201 = vrot.slane %v1196, %v1200
      %v1219 = vunpack.c.l.b16 %v1180
      %v1220 = vunpack.c.l.b16 %v1181
      %v1221 = vunpack.c.l.b16 %v1182
      %v1222 = vunpack.c.l.b16 %v1183
      %v1223 = vunpack.c.l.b16 %v1184
      %v1224 = vunpack.c.l.b16 %v1185
      %v1225 = vunpack.c.l.b16 %v1186
      %v1226 = vunpack.c.l.b16 %v1187
      %v1227 = vunpack.c.l.b16 %v1188
      %v1228 = vunpack.c.l.b16 %v1189
      %v1229 = vunpack.c.l.b16 %v1190
      %v1230 = vunpack.c.l.b16 %v1191
      %v1231 = vunpack.c.l.b16 %v1192
      %v1232 = vunpack.c.l.b16 %v1193
      %v1233 = vunpack.c.l.b16 %v1194
      %v1234 = vunpack.c.l.b16 %v1195
      %v1235 = vpack.c.b16 %v1220, %v1219
      %v1236 = vpack.c.b16 %v1222, %v1221
      %v1237 = vpack.c.b16 %v1224, %v1223
      %v1238 = vpack.c.b16 %v1226, %v1225
      %v1239 = vpack.c.b16 %v1228, %v1227
      %v1240 = vpack.c.b16 %v1230, %v1229
      %v1241 = vpack.c.b16 %v1232, %v1231
      %v1242 = vpack.c.b16 %v1234, %v1233
      %1251 = vmatprep.subr.bf16.mxu0 0
      %1252 = vmatpush1.bf16.msra.mxu0 %v1242
      %1253 = vmatprep.subr.bf16.mxu0 0
      %1254 = vmatpush1.bf16.msra.mxu0 %v1241
      %1255 = vmatprep.subr.bf16.mxu0 0
      %1256 = vmatpush1.bf16.msra.mxu0 %v1240
      %1257 = vmatprep.subr.bf16.mxu0 0
      %1258 = vmatpush1.bf16.msra.mxu0 %v1239
      %1259 = vmatprep.subr.bf16.mxu0 0
      %1260 = vmatpush1.bf16.msra.mxu0 %v1238
      %1261 = vmatprep.subr.bf16.mxu0 0
      %1262 = vmatpush1.bf16.msra.mxu0 %v1237
      %1263 = vmatprep.subr.bf16.mxu0 0
      %1264 = vmatpush1.bf16.msra.mxu0 %v1236
      %1265 = vmatprep.subr.bf16.mxu0 0
      %1266 = vmatpush1.bf16.msra.mxu0 %v1235
      %1267 = vmatprep.subr.bf16.mxu0 0
      %1268 = vmatpush2.bf16.msra.mxu0 0
      %1269 = vmatprep.subr.bf16.mxu0 0
      %1270 = vmatpush2.bf16.msra.mxu0 0
      %1271 = vmatprep.subr.bf16.mxu0 0
      %1272 = vmatpush2.bf16.msra.mxu0 0
      %1273 = vmatprep.subr.bf16.mxu0 0
      %1274 = vmatpush2.bf16.msra.mxu0 0
      %1275 = vmatprep.subr.bf16.mxu0 0
      %1276 = vmatpush2.bf16.msra.mxu0 0
      %1277 = vmatprep.subr.bf16.mxu0 0
      %1278 = vmatpush2.bf16.msra.mxu0 0
      %1279 = vmatprep.subr.bf16.mxu0 0
      %1280 = vmatpush2.bf16.msra.mxu0 0
      %1281 = vmatprep.subr.bf16.mxu0 0
      %1282 = vmatpush2.bf16.msra.mxu0 0
      %1283 = vmatprep.mubr.bf16.mxu0 0
      %1284 = vmatmul.mubr.bf16.gmra.mxu0 %v1177
      %v1285 = vpop.f32.mrf.mxu0
      %v1286 = vadd.f32 %v1201, %v1285
      %v1287 = vpop.f32.mrf.mxu0
      %v1288 = vpop.f32.mrf.mxu0
      %v1289 = vadd.f32 %v1201, %v1288
      %v1290 = vpop.f32.mrf.mxu0
      %1291 = vmatprep.mubr.bf16.mxu0 0
      %1292 = vmatmul.mubr.bf16.gmra.mxu0 %v1178
      %v1293 = vpop.f32.mrf.mxu0
      %v1294 = vadd.f32 %v1201, %v1293
      %v1295 = vpop.f32.mrf.mxu0
      %v1296 = vpop.f32.mrf.mxu0
      %v1297 = vadd.f32 %v1201, %v1296
      %v1298 = vpop.f32.mrf.mxu0
      %1299 = vmatprep.mubr.bf16.mxu0 0
      %1300 = vmatmul.mubr.bf16.gmra.mxu0 %v1179
      %v1301 = vpop.f32.mrf.mxu0
      %v1302 = vadd.f32 %v1201, %v1301
      %v1303 = vpop.f32.mrf.mxu0
      %v1304 = vpop.f32.mrf.mxu0
      %v1305 = vpop.f32.mrf.mxu0
      %1306 = vdwg.mxu0
      %1307 = vst [vmem:[#allocation12] sm:$0xff] %v1286
      %1308 = vst [vmem:[#allocation12 + $0x8] sm:$0xff] %v1289
      %1309 = vst [vmem:[#allocation12 + $0x10] sm:$0xff] %v1294
      %1310 = vst [vmem:[#allocation12 + $0x18] sm:$0xff] %v1297
      %1311 = vst [vmem:[#allocation12 + $0x20] sm:$0xff] %v1302
    $region57: #{tpu_custom_call.1} parent=1 // pred_fallthru
      _
    // Predicated region
    $region58: #{tpu_custom_call.1} parent=1 // pred_check
      _
    $region59: #{tpu_custom_call.1} parent=1 // pred_check_branch
      %1313 = sbr.rel (0) target = $region61
    $region60: #{tpu_custom_call.1} parent=1 // pred_region
      %s1315 = ssub.s32 640, 640
      %1316 = vsyncadd [#allocation5], %s1315
      %s1317 = sshll.u32 [#allocation12], 4
      %s1318 = int_to_ptr.vmem [resolvable:$true] %s1317
      %1323 = dma.vmem_to_hbm [thread:$0]  %s1318, 640, %s7, [#allocation5], 128, 128, 8
    $region61: #{tpu_custom_call.1} parent=1 // pred_fallthru
      _
    // Predicated region
    $region62: #{tpu_custom_call.1} parent=1 // pred_check
      _
    $region63: #{tpu_custom_call.1} parent=1 // pred_check_branch
      %1325 = sbr.rel (0) target = $region65
    $region64: #{tpu_custom_call.1} parent=1 // pred_region
      %1326 = dma.done [#allocation5], 640
    $region65: #{tpu_custom_call.1} parent=1 // pred_fallthru
      _
    %1327 = vsyncpa [#allocation4], 1
    %1328 = vsyncpa [#allocation7], 1
    %1329 = vsyncpa [#allocation10], 1
    %1330 = vsyncpa [#allocation5], 1

</llo_original>
